<compile_context>
chip_gen: v5e
topology: v5e:2x2
jax: 0.10.0
libtpu: 0.0.40
codegen_flags: <defaults>
</compile_context>

<pallas_src>
import functools
import math

import jax
import jax.numpy as jnp
from jax.experimental import pallas as pl
from jax.experimental.pallas import tpu as pltpu


# ---------------------------------------------------------------------------
# Small helpers
# ---------------------------------------------------------------------------
def _block_diag(a, b):
    top = jnp.concatenate([a, jnp.zeros((a.shape[0], b.shape[1]), a.dtype)], axis=1)
    bot = jnp.concatenate([jnp.zeros((b.shape[0], a.shape[1]), b.dtype), b], axis=1)
    return jnp.concatenate([top, bot], axis=0)


def _pick_hw_tile(hw):
    """Largest lane tile (multiple of 128, <=4096) dividing hw, else full hw."""
    if hw % 128 != 0:
        return hw
    for t in (4096, 2048, 1024, 512, 256, 128):
        if t <= hw and hw % t == 0:
            return t
    return hw


# ---------------------------------------------------------------------------
# Fused kernel: both branches of HALayer + channel concat, 2 matmuls total
# ---------------------------------------------------------------------------
def _ha_core(x, wa_ref, ba_ref, wb_ref, bb_ref, o_ref, split):
    # fused first conv1x1 + ReLU for BOTH branches (rows = [mid1 ; mid2])
    h = jnp.dot(wa_ref[...], x, preferred_element_type=jnp.float32)
    h = jnp.maximum(h + ba_ref[...], 0.0)                      # f32 elementwise
    # fused second conv1x1 (block-diagonal weights) -> rows already in concat order
    z = jnp.dot(wb_ref[...], h.astype(wb_ref.dtype), preferred_element_type=jnp.float32)
    z = z + bb_ref[...]
    row = jax.lax.broadcasted_iota(jnp.int32, z.shape, 0)
    y = jnp.where(row < split, jnp.maximum(z, 0.0), jax.nn.sigmoid(z))
    o_ref[...] = y.astype(o_ref.dtype)                         # one full unmasked store


def _ha_kernel_shared(x_ref, wa_ref, ba_ref, wb_ref, bb_ref, o_ref, *, split):
    # attention_feature aliased to main_feature: single input DMA feeds both branches
    _ha_core(x_ref[...], wa_ref, ba_ref, wb_ref, bb_ref, o_ref, split)


def _ha_kernel_separate(xm_ref, xa_ref, wa_ref, ba_ref, wb_ref, bb_ref, o_ref, *, split):
    # distinct attention feature: stack inputs along sublanes, W_a is block-diag(w1,w3)
    x = jnp.concatenate([xm_ref[...], xa_ref[...]], axis=0)
    _ha_core(x, wa_ref, ba_ref, wb_ref, bb_ref, o_ref, split)


# ---------------------------------------------------------------------------
# Wrapper: single pallas_call, grid over (batch, hw_tiles), both "parallel"
# ---------------------------------------------------------------------------
def ha_layer_forward(params, main_nchw, attention_nchw=None, *, compute_dtype=None):
    aliased = (attention_nchw is None) or (attention_nchw is main_nchw)
    n, c, h, w = main_nchw.shape
    hw = h * w
    hw_tile = _pick_hw_tile(hw)
    num_hw_tiles = hw // hw_tile

    out_dtype = main_nchw.dtype
    cdt = main_nchw.dtype if compute_dtype is None else compute_dtype

    split = params["split"]
    ba = params["ba"]                                  # (mid1+mid2, 1) f32
    bb = params["bb"]                                  # (c_out, 1)     f32
    wb = params["wb"].astype(cdt)                      # (c_out, mid1+mid2)
    c_out = wb.shape[0]

    # NCHW flattened to (N, C, H*W): channels-as-sublane, pixels-as-lane (free reshape)
    xm = main_nchw.reshape(n, c, hw).astype(cdt)

    weight_specs = [
        pl.BlockSpec((params["ba"].shape[0], c if aliased else None), None),  # placeholder, replaced below
    ]
    # (build specs explicitly below instead of the placeholder)
    del weight_specs

    if aliased:
        assert params["wa_shared"] is not None, (
            "attention_feature aliased to main_feature requires attention_channel == main_channel")
        wa = params["wa_shared"].astype(cdt)           # (mid1+mid2, c)
        kernel = functools.partial(_ha_kernel_shared, split=split)
        inputs = (xm, wa, ba, wb, bb)
        data_specs = [pl.BlockSpec((None, c, hw_tile), lambda b, t: (b, 0, t))]
    else:
        na, ca, ha_, wa_sp = attention_nchw.shape
        assert (na, ha_, wa_sp) == (n, h, w)
        xa = attention_nchw.reshape(n, ca, hw).astype(cdt)
        wa = params["wa_blkdiag"].astype(cdt)          # (mid1+mid2, c+ca)
        kernel = functools.partial(_ha_kernel_separate, split=split)
        inputs = (xm, xa, wa, ba, wb, bb)
        data_specs = [pl.BlockSpec((None, c, hw_tile), lambda b, t: (b, 0, t)),
                      pl.BlockSpec((None, ca, hw_tile), lambda b, t: (b, 0, t))]

    param_specs = [
        pl.BlockSpec(wa.shape, lambda b, t: (0, 0)),
        pl.BlockSpec(ba.shape, lambda b, t: (0, 0)),
        pl.BlockSpec(wb.shape, lambda b, t: (0, 0)),
        pl.BlockSpec(bb.shape, lambda b, t: (0, 0)),
    ]

    out = pl.pallas_call(
        kernel,
        out_shape=jax.ShapeDtypeStruct((n, c_out, hw), out_dtype),
        grid=(n, num_hw_tiles),
        in_specs=data_specs + param_specs,
        out_specs=pl.BlockSpec((None, c_out, hw_tile), lambda b, t: (b, 0, t)),
        compiler_params=pltpu.CompilerParams(
            dimension_semantics=("parallel", "parallel"),
            vmem_limit_bytes=32 * 1024 * 1024,
        ),
    )(*inputs)

    return out.reshape(n, c_out, h, w)


# ---------------------------------------------------------------------------
# Parameter init (mirrors kaiming_normal_(fan_out, relu) + default Conv2d bias
# init). Raw weights kept for the reference; fused/stacked forms pre-computed
# once here so the pallas_call takes only 4 parameter tensors.
# ---------------------------------------------------------------------------
def init_ha_layer(key, main_channel, ga_channel=1, reduction=16, attention_channel=None):
    if attention_channel is None:
        attention_channel = main_channel
    assert main_channel > ga_channel
    mid1 = max(8, main_channel // reduction)
    mid2 = max(8, attention_channel // reduction)

    def conv_init(k, out_c, in_c):
        kw, kb = jax.random.split(k)
        std = math.sqrt(2.0 / out_c)                   # kaiming normal, fan_out, relu
        wgt = jax.random.normal(kw, (out_c, in_c), jnp.float32) * std
        bound = 1.0 / math.sqrt(in_c)                  # default Conv2d bias init
        bias = jax.random.uniform(kb, (out_c, 1), jnp.float32, -bound, bound)
        return wgt, bias

    k1, k2, k3, k4 = jax.random.split(key, 4)
    w1, b1 = conv_init(k1, mid1, main_channel)
    w2, b2 = conv_init(k2, main_channel - ga_channel, mid1)
    w3, b3 = conv_init(k3, mid2, attention_channel)
    w4, b4 = conv_init(k4, ga_channel, mid2)

    params = {"w1": w1, "b1": b1, "w2": w2, "b2": b2,
              "w3": w3, "b3": b3, "w4": w4, "b4": b4}
    params["wa_shared"] = (jnp.concatenate([w1, w3], axis=0)
                           if attention_channel == main_channel else None)
    params["wa_blkdiag"] = _block_diag(w1, w3)
    params["ba"] = jnp.concatenate([b1, b3], axis=0)
    params["wb"] = _block_diag(w2, w4)
    params["bb"] = jnp.concatenate([b2, b4], axis=0)
    params["split"] = int(main_channel - ga_channel)
    return params


# ---------------------------------------------------------------------------
# Pure-JAX reference (exact f32) for correctness checking
# ---------------------------------------------------------------------------
def ha_layer_reference(params, main_nchw, attention_nchw=None):
    if attention_nchw is None:
        attention_nchw = main_nchw
    n, c, h, w = main_nchw.shape
    xm = main_nchw.reshape(n, c, h * w).astype(jnp.float32)
    xa = attention_nchw.reshape(n, attention_nchw.shape[1], h * w).astype(jnp.float32)

    def conv1x1(wgt, bias, x):
        y = jnp.einsum("oc,ncp->nop", wgt, x, precision=jax.lax.Precision.HIGHEST)
        return y + bias[None]

    h1 = jax.nn.relu(conv1x1(params["w1"], params["b1"], xm))
    x1 = jax.nn.relu(conv1x1(params["w2"], params["b2"], h1))
    h2 = jax.nn.relu(conv1x1(params["w3"], params["b3"], xa))
    x2 = jax.nn.sigmoid(conv1x1(params["w4"], params["b4"], h2))
    y = jnp.concatenate([x1, x2], axis=1)
    return y.reshape(n, -1, h, w)


if __name__ == "__main__":
    key = jax.random.PRNGKey(0)

    # Module config: main_channel=32, ga_channel=1, reduction=16 -> mid_c = 8
    main_channel, ga_channel, reduction = 32, 1, 16
    batch, H, W = 2, 16, 16

    k_param, k_x, k_a = jax.random.split(key, 3)
    params = init_ha_layer(k_param, main_channel, ga_channel, reduction)
    x = jax.random.normal(k_x, (batch, main_channel, H, W), jnp.float32)

    # 1) default path (attention_feature=None -> aliased, single-input kernel), f32
    out = jax.block_until_ready(ha_layer_forward(params, x))
    ref = ha_layer_reference(params, x)
    assert out.shape == (batch, main_channel, H, W), out.shape
    assert bool(jnp.allclose(out, ref, rtol=1e-4, atol=1e-4)), \
        float(jnp.max(jnp.abs(out - ref)))

    # 2) distinct attention feature path (block-diag first-layer kernel), f32
    attn = jax.random.normal(k_a, (batch, main_channel, H, W), jnp.float32)
    out2 = jax.block_until_ready(ha_layer_forward(params, x, attn))
    ref2 = ha_layer_reference(params, x, attn)
    assert bool(jnp.allclose(out2, ref2, rtol=1e-4, atol=1e-4)), \
        float(jnp.max(jnp.abs(out2 - ref2)))

    # 3) bf16 matmul operands / f32 accumulation path (halved HBM bytes on v6e/v7x)
    out3 = jax.block_until_ready(
        ha_layer_forward(params, x, compute_dtype=jnp.bfloat16))
    assert bool(jnp.allclose(out3.astype(jnp.float32), ref, rtol=1e-1, atol=1e-1)), \
        float(jnp.max(jnp.abs(out3.astype(jnp.float32) - ref)))

    print("KERNEL_OK")
</pallas_src>

<mosaic_0001>
module attributes {stable_mosaic.version = 11 : i64} {
  func.func @_ha_kernel_shared(%arg0: i32, %arg1: i32, %arg2: memref<1x32x256xf32, #tpu.memory_space<vmem>>, %arg3: memref<16x32xf32, #tpu.memory_space<vmem>>, %arg4: memref<16x1xf32, #tpu.memory_space<vmem>>, %arg5: memref<32x16xf32, #tpu.memory_space<vmem>>, %arg6: memref<32x1xf32, #tpu.memory_space<vmem>>, %arg7: memref<1x32x256xf32, #tpu.memory_space<vmem>>) attributes {dimension_semantics = [#tpu.dimension_semantics<parallel>, #tpu.dimension_semantics<parallel>], iteration_bounds = array<i64: 2, 1>, scalar_prefetch = 0 : i64, scratch_operands = 0 : i64, tpu.core_type = #tpu.core_type<tc>, window_params = [{transform_indices = @transform_0, window_bounds = array<i64: 1, 32, 256>}, {pipeline_mode = #tpu.pipeline_mode<synchronous>, transform_indices = @transform_1, window_bounds = array<i64: 16, 32>}, {pipeline_mode = #tpu.pipeline_mode<synchronous>, transform_indices = @transform_2, window_bounds = array<i64: 16, 1>}, {pipeline_mode = #tpu.pipeline_mode<synchronous>, transform_indices = @transform_3, window_bounds = array<i64: 32, 16>}, {pipeline_mode = #tpu.pipeline_mode<synchronous>, transform_indices = @transform_4, window_bounds = array<i64: 32, 1>}, {transform_indices = @transform_5, window_bounds = array<i64: 1, 32, 256>}]} {
    %c0 = arith.constant 0 : index
    %c0_0 = arith.constant 0 : index
    %c0_1 = arith.constant 0 : index
    %0 = vector.load %arg2[%c0, %c0_0, %c0_1] : memref<1x32x256xf32, #tpu.memory_space<vmem>>, vector<1x32x256xf32>
    %1 = vector.shape_cast %0 : vector<1x32x256xf32> to vector<32x256xf32>
    %c0_2 = arith.constant 0 : index
    %c0_3 = arith.constant 0 : index
    %2 = vector.load %arg3[%c0_2, %c0_3] : memref<16x32xf32, #tpu.memory_space<vmem>>, vector<16x32xf32>
    %cst = arith.constant dense<0.000000e+00> : vector<16x256xf32>
    %3 = tpu.matmul %2, %1, %cst {dimension_numbers = #tpu.dot_dimension_numbers<[1], [0], [0], [1], [0, 0, 1, 1], [], []>} : vector<16x32xf32>, vector<32x256xf32>, vector<16x256xf32> -> vector<16x256xf32>
    %c0_4 = arith.constant 0 : index
    %c0_5 = arith.constant 0 : index
    %4 = vector.load %arg4[%c0_4, %c0_5] : memref<16x1xf32, #tpu.memory_space<vmem>>, vector<16x1xf32>
    %5 = vector.broadcast %4 : vector<16x1xf32> to vector<16x256xf32>
    %6 = arith.addf %3, %5 : vector<16x256xf32>
    %cst_6 = arith.constant 0.000000e+00 : f32
    %7 = vector.broadcast %cst_6 : f32 to vector<16x256xf32>
    %8 = arith.maximumf %6, %7 : vector<16x256xf32>
    %c0_7 = arith.constant 0 : index
    %c0_8 = arith.constant 0 : index
    %9 = vector.load %arg5[%c0_7, %c0_8] : memref<32x16xf32, #tpu.memory_space<vmem>>, vector<32x16xf32>
    %cst_9 = arith.constant dense<0.000000e+00> : vector<32x256xf32>
    %10 = tpu.matmul %9, %8, %cst_9 {dimension_numbers = #tpu.dot_dimension_numbers<[1], [0], [0], [1], [0, 0, 1, 1], [], []>} : vector<32x16xf32>, vector<16x256xf32>, vector<32x256xf32> -> vector<32x256xf32>
    %c0_10 = arith.constant 0 : index
    %c0_11 = arith.constant 0 : index
    %11 = vector.load %arg6[%c0_10, %c0_11] : memref<32x1xf32, #tpu.memory_space<vmem>>, vector<32x1xf32>
    %12 = vector.broadcast %11 : vector<32x1xf32> to vector<32x256xf32>
    %13 = arith.addf %10, %12 : vector<32x256xf32>
    %14 = tpu.iota {dimensions = array<i32: 0>} : vector<32x256xi32>
    %c31_i32 = arith.constant 31 : i32
    %15 = vector.broadcast %c31_i32 : i32 to vector<32x256xi32>
    %16 = arith.cmpi slt, %14, %15 : vector<32x256xi32>
    %cst_12 = arith.constant 0.000000e+00 : f32
    %17 = vector.broadcast %cst_12 : f32 to vector<32x256xf32>
    %18 = arith.maximumf %13, %17 : vector<32x256xf32>
    %19 = arith.negf %13 : vector<32x256xf32>
    %20 = math.exp %19 : vector<32x256xf32>
    %cst_13 = arith.constant 1.000000e+00 : f32
    %21 = vector.broadcast %cst_13 : f32 to vector<32x256xf32>
    %22 = arith.addf %21, %20 : vector<32x256xf32>
    %23 = arith.divf %21, %22 : vector<32x256xf32>
    %24 = arith.select %16, %18, %23 : vector<32x256xi1>, vector<32x256xf32>
    %c0_14 = arith.constant 0 : index
    %c0_15 = arith.constant 0 : index
    %c0_16 = arith.constant 0 : index
    %25 = vector.load %arg7[%c0_14, %c0_15, %c0_16] : memref<1x32x256xf32, #tpu.memory_space<vmem>>, vector<1x32x256xf32>
    %26 = vector.shape_cast %25 : vector<1x32x256xf32> to vector<32x256xf32>
    %27 = vector.shape_cast %24 : vector<32x256xf32> to vector<1x32x256xf32>
    tpu.vector_store %arg7[%c0_14, %c0_15, %c0_16], %27 {strides = array<i32>} : memref<1x32x256xf32, #tpu.memory_space<vmem>>, vector<1x32x256xf32>,
    return
  }
  func.func @transform_0(%arg0: i32, %arg1: i32) -> (i32, i32, i32) {
    %c0_i32 = arith.constant 0 : i32
    %c0_i32_0 = arith.constant 0 : i32
    return %arg0, %c0_i32, %arg1 : i32, i32, i32
  }
  func.func @transform_1(%arg0: i32, %arg1: i32) -> (i32, i32) {
    %c0_i32 = arith.constant 0 : i32
    %c0_i32_0 = arith.constant 0 : i32
    %c0_i32_1 = arith.constant 0 : i32
    return %c0_i32, %c0_i32_0 : i32, i32
  }
  func.func @transform_2(%arg0: i32, %arg1: i32) -> (i32, i32) {
    %c0_i32 = arith.constant 0 : i32
    %c0_i32_0 = arith.constant 0 : i32
    %c0_i32_1 = arith.constant 0 : i32
    return %c0_i32, %c0_i32_0 : i32, i32
  }
  func.func @transform_3(%arg0: i32, %arg1: i32) -> (i32, i32) {
    %c0_i32 = arith.constant 0 : i32
    %c0_i32_0 = arith.constant 0 : i32
    %c0_i32_1 = arith.constant 0 : i32
    return %c0_i32, %c0_i32_0 : i32, i32
  }
  func.func @transform_4(%arg0: i32, %arg1: i32) -> (i32, i32) {
    %c0_i32 = arith.constant 0 : i32
    %c0_i32_0 = arith.constant 0 : i32
    %c0_i32_1 = arith.constant 0 : i32
    return %c0_i32, %c0_i32_0 : i32, i32
  }
  func.func @transform_5(%arg0: i32, %arg1: i32) -> (i32, i32, i32) {
    %c0_i32 = arith.constant 0 : i32
    %c0_i32_0 = arith.constant 0 : i32
    return %arg0, %c0_i32, %arg1 : i32, i32, i32
  }
}

</mosaic_0001>

<llo_original>
// kernel: tpu_custom_call.1
$region0: #{tpu_custom_call.1}
  #allocation0 [shape = 'u32[]', space=smem, size = 0x4, offset = 0x4, fixed_abs, tag = 'smem constant byte address 0x4 - core index']
  #allocation1 [shape = 'u32[72,128]{1,0:T(1,128)}', space=vmem, size = 0x9000, scoped, tag = 'internal scratch']
  %s0 = inlined_call_operand.hbm [shape: f32[2,32,256], index: 0, kind: input, shape index: {}]
  %s1 = inlined_call_operand.vmem [shape: f32[16,32], index: 1, kind: input, shape index: {}]
  %s2 = inlined_call_operand.vmem [shape: f32[16,1], index: 2, kind: input, shape index: {}]
  %s3 = inlined_call_operand.vmem [shape: f32[32,16], index: 3, kind: input, shape index: {}]
  %s4 = inlined_call_operand.vmem [shape: f32[32,1], index: 4, kind: input, shape index: {}]
  %s5 = inlined_call_operand.hbm [shape: f32[2,32,256], index: 5, kind: output, shape index: {}]
  %s6 = sld [smem:[#allocation0]]
  $region57: #{tpu_custom_call.1} parent=0
    _
  %s8 = ssub.s32 1, %s6
  %s9 = scalar_select 0, %s8, %s6
  $region1: #{tpu_custom_call.1} parent=0
    #allocation2 [shape = 'u8[65536]{0}', space=vmem, size = 0x10000, scoped, tag = 'input window, operand 0']
    #allocation3 [shape = 's32[2]{0}', space=sflag, size = 0x8, scoped, tag = 'scoped memory for tpu_custom_call.1']
    #allocation4 [shape = 's32[2]{0}', space=sflag, size = 0x8, scoped, tag = 'scoped memory for tpu_custom_call.1']
    #allocation5 [shape = 'u8[65536]{0}', space=vmem, size = 0x10000, scoped, tag = 'output window, operand 0']
    %10 = vsyncpa [#allocation3], 0
    %s11 = scalar_lea.sflag [#allocation3], 1
    %12 = vsyncpa %s11, 0
    %13 = vsyncpa [#allocation4], 0
    %s14 = scalar_lea.sflag [#allocation4], 1
    %15 = vsyncpa %s14, 0
    loop: start=0, step=1, limit=4
    $region2: #{tpu_custom_call.1} parent=1 // loop_pre_header
      _
    $region3: #{tpu_custom_call.1} parent=1 // loop_header
      %s17 = sphi 0, %s21
      %p18 = scmp.ge.s32.totalorder %s17, 4
      %s24 = sphi 0, %s36
      %s25 = sphi 0, %s32
      %s26 = sphi 0, %s24
      %s27 = sphi 0, %s25
      %s28 = sphi 0, %s26
      %s29 = sphi 0, %s27
      %s41 = sphi 0, %s43
      %s44 = sphi 0, %s41
      %s45 = sphi 0, %s44
      %s61 = sphi 0, %s45
      %s65 = sphi 0, %s65
      %s67 = sphi 0, %s65
      %s68 = sphi 0, %s67
      %s82 = sphi 0, %s68
      %s86 = sphi 0, %s86
      %s88 = sphi 0, %s86
      %s89 = sphi 0, %s88
      %s103 = sphi 0, %s89
      %s107 = sphi 0, %s107
      %s109 = sphi 0, %s107
      %s110 = sphi 0, %s109
      %s124 = sphi 0, %s110
      %s128 = sphi 0, %s128
      %s130 = sphi 0, %s128
      %s131 = sphi 0, %s130
      %s145 = sphi 0, %s131
      %s153 = sphi 0, %s155
      %s156 = sphi 0, %s153
      %s157 = sphi 0, %s156
      %s173 = sphi 0, %s157
    $region4: #{tpu_custom_call.1} parent=1 // loop_header_branch
      %20 = sbr.rel (%p18) target = $region8
    $region5: #{tpu_custom_call.1} parent=1 // loop_body
      %s22 = ssub.s32 %s17, 1
      %s23 = ssub.s32 %s17, 2
      %s30 = sadd.s32 1, %s25
      %p31 = scmp.ge.s32.totalorder %s30, 1
      %s32 = scalar_select %p31, 0, %s30
      %s33 = sadd.s32 1, %s24
      %s34 = scalar_select %p31, %s33, %s24
      %p35 = scmp.ge.s32.totalorder %s34, 2
      %s36 = scalar_select %p35, 0, %s34
      %s37 = ssub.s32 %s24, %s36
      %s38 = ssub.s32 %s25, %s32
      %s39 = sor.u32 %s37, %s38
      %p40 = scmp.eq.s32.totalorder %s39, 0
      %s42 = sadd.s32 %s41, 1
      %s43 = scalar_select %p40, %s41, %s42
      %p46 = pneg %p40
      %p47 = scmp.eq.s32.totalorder %s17, 1
      %p48 = por %p46, %p47
      %p49 = scmp.ne.s32.totalorder %s41, %s44
      %p50 = scmp.eq.s32.totalorder %s17, 0
      %p51 = por %p49, %p50
      %p52 = scmp.ne.s32.totalorder %s41, %s44
      %p53 = scmp.eq.s32.totalorder %s22, 1
      %p54 = por %p52, %p53
      %p55 = scmp.ne.s32.totalorder %s44, %s45
      %p56 = scmp.eq.s32.totalorder %s22, 0
      %p57 = por %p55, %p56
      %p58 = scmp.ne.s32.totalorder %s44, %s45
      %p59 = scmp.eq.s32.totalorder %s23, 1
      %p60 = por %p58, %p59
      %p62 = scmp.ne.s32.totalorder %s45, %s61
      %p63 = scmp.eq.s32.totalorder %s23, 0
      %p64 = por %p62, %p63
      %s66 = sadd.s32 %s65, 1
      %p69 = scmp.eq.s32.totalorder %s17, 1
      %p70 = scmp.ne.s32.totalorder %s65, %s67
      %p71 = scmp.eq.s32.totalorder %s17, 0
      %p72 = por %p70, %p71
      %p73 = scmp.ne.s32.totalorder %s65, %s67
      %p74 = scmp.eq.s32.totalorder %s22, 1
      %p75 = por %p73, %p74
      %p76 = scmp.ne.s32.totalorder %s67, %s68
      %p77 = scmp.eq.s32.totalorder %s22, 0
      %p78 = por %p76, %p77
      %p79 = scmp.ne.s32.totalorder %s67, %s68
      %p80 = scmp.eq.s32.totalorder %s23, 1
      %p81 = por %p79, %p80
      %p83 = scmp.ne.s32.totalorder %s68, %s82
      %p84 = scmp.eq.s32.totalorder %s23, 0
      %p85 = por %p83, %p84
      %s87 = sadd.s32 %s86, 1
      %p90 = scmp.eq.s32.totalorder %s17, 1
      %p91 = scmp.ne.s32.totalorder %s86, %s88
      %p92 = scmp.eq.s32.totalorder %s17, 0
      %p93 = por %p91, %p92
      %p94 = scmp.ne.s32.totalorder %s86, %s88
      %p95 = scmp.eq.s32.totalorder %s22, 1
      %p96 = por %p94, %p95
      %p97 = scmp.ne.s32.totalorder %s88, %s89
      %p98 = scmp.eq.s32.totalorder %s22, 0
      %p99 = por %p97, %p98
      %p100 = scmp.ne.s32.totalorder %s88, %s89
      %p101 = scmp.eq.s32.totalorder %s23, 1
      %p102 = por %p100, %p101
      %p104 = scmp.ne.s32.totalorder %s89, %s103
      %p105 = scmp.eq.s32.totalorder %s23, 0
      %p106 = por %p104, %p105
      %s108 = sadd.s32 %s107, 1
      %p111 = scmp.eq.s32.totalorder %s17, 1
      %p112 = scmp.ne.s32.totalorder %s107, %s109
      %p113 = scmp.eq.s32.totalorder %s17, 0
      %p114 = por %p112, %p113
      %p115 = scmp.ne.s32.totalorder %s107, %s109
      %p116 = scmp.eq.s32.totalorder %s22, 1
      %p117 = por %p115, %p116
      %p118 = scmp.ne.s32.totalorder %s109, %s110
      %p119 = scmp.eq.s32.totalorder %s22, 0
      %p120 = por %p118, %p119
      %p121 = scmp.ne.s32.totalorder %s109, %s110
      %p122 = scmp.eq.s32.totalorder %s23, 1
      %p123 = por %p121, %p122
      %p125 = scmp.ne.s32.totalorder %s110, %s124
      %p126 = scmp.eq.s32.totalorder %s23, 0
      %p127 = por %p125, %p126
      %s129 = sadd.s32 %s128, 1
      %p132 = scmp.eq.s32.totalorder %s17, 1
      %p133 = scmp.ne.s32.totalorder %s128, %s130
      %p134 = scmp.eq.s32.totalorder %s17, 0
      %p135 = por %p133, %p134
      %p136 = scmp.ne.s32.totalorder %s128, %s130
      %p137 = scmp.eq.s32.totalorder %s22, 1
      %p138 = por %p136, %p137
      %p139 = scmp.ne.s32.totalorder %s130, %s131
      %p140 = scmp.eq.s32.totalorder %s22, 0
      %p141 = por %p139, %p140
      %p142 = scmp.ne.s32.totalorder %s130, %s131
      %p143 = scmp.eq.s32.totalorder %s23, 1
      %p144 = por %p142, %p143
      %p146 = scmp.ne.s32.totalorder %s131, %s145
      %p147 = scmp.eq.s32.totalorder %s23, 0
      %p148 = por %p146, %p147
      %s149 = ssub.s32 %s24, %s36
      %s150 = ssub.s32 %s25, %s32
      %s151 = sor.u32 %s149, %s150
      %p152 = scmp.eq.s32.totalorder %s151, 0
      %s154 = sadd.s32 %s153, 1
      %s155 = scalar_select %p152, %s153, %s154
      %p158 = pneg %p152
      %p159 = scmp.eq.s32.totalorder %s17, 1
      %p160 = por %p158, %p159
      %p161 = scmp.ne.s32.totalorder %s153, %s156
      %p162 = scmp.eq.s32.totalorder %s17, 0
      %p163 = por %p161, %p162
      %p164 = scmp.ne.s32.totalorder %s153, %s156
      %p165 = scmp.eq.s32.totalorder %s22, 1
      %p166 = por %p164, %p165
      %p167 = scmp.ne.s32.totalorder %s156, %s157
      %p168 = scmp.eq.s32.totalorder %s22, 0
      %p169 = por %p167, %p168
      %p170 = scmp.ne.s32.totalorder %s156, %s157
      %p171 = scmp.eq.s32.totalorder %s23, 1
      %p172 = por %p170, %p171
      %p174 = scmp.ne.s32.totalorder %s157, %s173
      %p175 = scmp.eq.s32.totalorder %s23, 0
      %p176 = por %p174, %p175
      %p177 = scmp.le.s32.totalorder 1, %s17
      %p178 = scmp.lt.s32.totalorder %s17, 3
      %p179 = pnand %p177, %p178
      %p180 = pneg %p179
      // Predicated region
      $region9: #{tpu_custom_call.1} parent=5 // pred_check
        _
      $region10: #{tpu_custom_call.1} parent=5 // pred_check_branch
        %182 = sbr.rel (%p179) target = $region12
      $region11: #{tpu_custom_call.1} parent=5 // pred_region
        %s183 = ssub.s32 %s17, 1
        // Predicated region
        $region13: #{tpu_custom_call.1} parent=11 // pred_check
          %p184 = pneg %p78
        $region14: #{tpu_custom_call.1} parent=11 // pred_check_branch
          %186 = sbr.rel (%p184) target = $region16
        $region15: #{tpu_custom_call.1} parent=11 // pred_region
          _
        $region16: #{tpu_custom_call.1} parent=11 // pred_fallthru
          _
        // Predicated region
        $region17: #{tpu_custom_call.1} parent=11 // pred_check
          %p187 = pneg %p99
        $region18: #{tpu_custom_call.1} parent=11 // pred_check_branch
          %189 = sbr.rel (%p187) target = $region20
        $region19: #{tpu_custom_call.1} parent=11 // pred_region
          _
        $region20: #{tpu_custom_call.1} parent=11 // pred_fallthru
          _
        // Predicated region
        $region21: #{tpu_custom_call.1} parent=11 // pred_check
          %p190 = pneg %p120
        $region22: #{tpu_custom_call.1} parent=11 // pred_check_branch
          %192 = sbr.rel (%p190) target = $region24
        $region23: #{tpu_custom_call.1} parent=11 // pred_region
          _
        $region24: #{tpu_custom_call.1} parent=11 // pred_fallthru
          _
        // Predicated region
        $region25: #{tpu_custom_call.1} parent=11 // pred_check
          %p193 = pneg %p141
        $region26: #{tpu_custom_call.1} parent=11 // pred_check_branch
          %195 = sbr.rel (%p193) target = $region28
        $region27: #{tpu_custom_call.1} parent=11 // pred_region
          _
        $region28: #{tpu_custom_call.1} parent=11 // pred_fallthru
          _
      $region12: #{tpu_custom_call.1} parent=5 // pred_fallthru
        _
      %p196 = scmp.lt.s32.totalorder %s17, 2
      // Predicated region
      $region29: #{tpu_custom_call.1} parent=5 // pred_check
        %p197 = pneg %p196
      $region30: #{tpu_custom_call.1} parent=5 // pred_check_branch
        %199 = sbr.rel (%p197) target = $region32
      $region31: #{tpu_custom_call.1} parent=5 // pred_region
        // Predicated region
        $region33: #{tpu_custom_call.1} parent=31 // pred_check
          %p200 = pneg %p51
        $region34: #{tpu_custom_call.1} parent=31 // pred_check_branch
          %202 = sbr.rel (%p200) target = $region36
        $region35: #{tpu_custom_call.1} parent=31 // pred_region
          %s203 = sand.u32 %s41, 1
          %s204 = scalar_lea.sflag [#allocation3], %s203
          %s205 = sand.u32 %s41, 1
          %s206 = smul.addr %s205, 64
          %s207 = scalar_lea.vmem [#allocation2], %s206
          %s208 = smul.u32 2, %s25
          %210 = vsyncadd %s204, 0
          %s211 = smul.addr %s24, 8
          %s212 = sadd.s32 %s208, %s211
          %s213 = smul.addr %s212, 8
          %s214 = scalar_lea.hbm %s0, %s213
          %s215 = sshll.u32 %s214, 4
          %s216 = int_to_ptr.hbm [resolvable:$true] %s215
          %s217 = sshll.u32 %s207, 4
          %s218 = int_to_ptr.vmem [resolvable:$true] %s217
          %223 = dma.hbm_to_vmem [thread:$0]  %s216, 1024, %s218, %s204, 256, 256, 16
        $region36: #{tpu_custom_call.1} parent=31 // pred_fallthru
          _
      $region32: #{tpu_custom_call.1} parent=5 // pred_fallthru
        _
      %p224 = scmp.le.s32.totalorder 1, %s17
      %p225 = scmp.lt.s32.totalorder %s17, 3
      %p226 = pnand %p224, %p225
      %p227 = pneg %p226
      // Predicated region
      $region37: #{tpu_custom_call.1} parent=5 // pred_check
        _
      $region38: #{tpu_custom_call.1} parent=5 // pred_check_branch
        %229 = sbr.rel (%p226) target = $region40
      $region39: #{tpu_custom_call.1} parent=5 // pred_region
        %s230 = ssub.s32 %s17, 1
        %s231 = sand.u32 %s44, 1
        %s232 = scalar_lea.sflag [#allocation3], %s231
        %s233 = sand.u32 %s44, 1
        %s234 = smul.addr %s233, 64
        %s235 = scalar_lea.vmem [#allocation2], %s234
        // Predicated region
        $region41: #{tpu_custom_call.1} parent=39 // pred_check
          %p236 = pneg %p57
        $region42: #{tpu_custom_call.1} parent=39 // pred_check_branch
          %238 = sbr.rel (%p236) target = $region44
        $region43: #{tpu_custom_call.1} parent=39 // pred_region
          %240 = dma.done %s232, 1024
        $region44: #{tpu_custom_call.1} parent=39 // pred_fallthru
          _
        %s241 = sand.u32 %s44, 1
        %s242 = scalar_lea.sflag [#allocation3], %s241
        %s243 = sand.u32 %s44, 1
        %s244 = smul.addr %s243, 64
        %s245 = scalar_lea.vmem [#allocation2], %s244
        %p246 = pneg %p57
        %p247 = pneg %p54
        %p248 = pneg %p78
        %p249 = pneg %p75
        %p250 = pneg %p99
        %p251 = pneg %p96
        %p252 = pneg %p120
        %p253 = pneg %p117
        %p254 = pneg %p141
        %p255 = pneg %p138
        %p256 = pneg %p169
        %p257 = pneg %p166
        %s258 = sand.u32 %s156, 1
        %s259 = scalar_lea.sflag [#allocation4], %s258
        %s260 = sand.u32 %s156, 1
        %s261 = smul.addr %s260, 64
        %s262 = scalar_lea.vmem [#allocation5], %s261
        %s263 = smul.u32 2, %s27
        %s264 = smul.u32 2, %s27
        %v265 = vld [vmem:[%s235] sm:$0xff]
        %v266 = vld [vmem:[%s235 + $0x8] sm:$0xff]
        %v267 = vld [vmem:[%s235 + $0x10] sm:$0xff]
        %v268 = vld [vmem:[%s235 + $0x18] sm:$0xff]
        %v269 = vld [vmem:[%s235 + $0x20] sm:$0xff]
        %v270 = vld [vmem:[%s235 + $0x28] sm:$0xff]
        %v271 = vld [vmem:[%s235 + $0x30] sm:$0xff]
        %v272 = vld [vmem:[%s235 + $0x38] sm:$0xff]
        %v273 = vld [vmem:[%s1] sm:$0xff]
        %v274 = vld [vmem:[%s1 + $0x8] sm:$0xff]
        %v275 = vld [vmem:[%s2] sm:$0xff]
        %v276 = vld [vmem:[%s2 + $0x8] sm:$0xff]
        %278 = vset.pattern.permute.xlu0 0
        %279 = vperm.xlu0 %278, %v275
        %v280 = vpop.permute.xlu0 %279
        %283 = vset.pattern.permute.xlu0 0
        %284 = vperm.xlu0 %283, %v276
        %v285 = vpop.permute.xlu0 %284
        %vm287 = vcmask 261120
        %v289 = vsel %vm287, %v273, 0
        %v292 = vsel %vm287, %v274, 0
        %294 = vmatpush.msra.mxu0 0.0
        %295 = vmatpush.msra.mxu0 0.0
        %296 = vmatpush.msra.mxu0 0.0
        %297 = vmatpush.msra.mxu0 0.0
        %298 = vmatpush.msra.mxu0 0.0
        %299 = vmatpush.msra.mxu0 0.0
        %300 = vmatpush.msra.mxu0 0.0
        %301 = vmatpush.msra.mxu0 0.0
        %302 = vmatpush.msra.mxu0 0.0
        %303 = vmatpush.msra.mxu0 0.0
        %304 = vmatpush.msra.mxu0 0.0
        %305 = vmatpush.msra.mxu0 0.0
        %306 = vmatpush.msra.mxu0 %v271
        %307 = vmatpush.msra.mxu0 %v269
        %308 = vmatpush.msra.mxu0 %v267
        %309 = vmatpush.msra.mxu0 %v265
        %310 = vmatmul.f32.gmra.mxu0 %v289
        %v311 = vpop.f32.mrf.mxu0
        %v312 = vadd.f32 %v280, %v311
        %313 = vmatmul.f32.gmra.mxu0 %v292
        %v314 = vpop.f32.mrf.mxu0
        %v315 = vadd.f32 %v285, %v314
        %316 = vdwg.mxu0
        %317 = vmatpush.msra.mxu0 0.0
        %318 = vmatpush.msra.mxu0 0.0
        %319 = vmatpush.msra.mxu0 0.0
        %320 = vmatpush.msra.mxu0 0.0
        %321 = vmatpush.msra.mxu0 0.0
        %322 = vmatpush.msra.mxu0 0.0
        %323 = vmatpush.msra.mxu0 0.0
        %324 = vmatpush.msra.mxu0 0.0
        %325 = vmatpush.msra.mxu0 0.0
        %326 = vmatpush.msra.mxu0 0.0
        %327 = vmatpush.msra.mxu0 0.0
        %328 = vmatpush.msra.mxu0 0.0
        %329 = vmatpush.msra.mxu0 %v272
        %330 = vmatpush.msra.mxu0 %v270
        %331 = vmatpush.msra.mxu0 %v268
        %332 = vmatpush.msra.mxu0 %v266
        %333 = vmatmul.f32.gmra.mxu0 %v289
        %v334 = vpop.f32.mrf.mxu0
        %v335 = vadd.f32 %v280, %v334
        %336 = vmatmul.f32.gmra.mxu0 %v292
        %v337 = vpop.f32.mrf.mxu0
        %v338 = vadd.f32 %v285, %v337
        %339 = vdwg.mxu0
        %v340 = vmax.f32 %v312, 0.0
        %v341 = vmax.f32 %v335, 0.0
        %v342 = vmax.f32 %v315, 0.0
        %v343 = vmax.f32 %v338, 0.0
        %v344 = vld [vmem:[%s3] sm:$0xff]
        %v345 = vld [vmem:[%s3 + $0x8] sm:$0xff]
        %v346 = vld [vmem:[%s3 + $0x10] sm:$0xff]
        %v347 = vld [vmem:[%s3 + $0x18] sm:$0xff]
        %v348 = vld [vmem:[%s4] sm:$0xff]
        %v349 = vld [vmem:[%s4 + $0x8] sm:$0xff]
        %v350 = vld [vmem:[%s4 + $0x10] sm:$0xff]
        %v351 = vld [vmem:[%s4 + $0x18] sm:$0xff]
        %353 = vset.pattern.permute.xlu0 0
        %354 = vperm.xlu0 %353, %v348
        %v355 = vpop.permute.xlu0 %354
        %358 = vset.pattern.permute.xlu0 0
        %359 = vperm.xlu0 %358, %v349
        %v360 = vpop.permute.xlu0 %359
        %363 = vset.pattern.permute.xlu0 0
        %364 = vperm.xlu0 %363, %v350
        %v365 = vpop.permute.xlu0 %364
        %368 = vset.pattern.permute.xlu0 0
        %369 = vperm.xlu0 %368, %v351
        %v370 = vpop.permute.xlu0 %369
        %vm372 = vcmask 130048
        %v374 = vsel %vm372, %v344, 0
        %v377 = vsel %vm372, %v345, 0
        %v380 = vsel %vm372, %v346, 0
        %v383 = vsel %vm372, %v347, 0
        %385 = vmatpush.msra.mxu0 0.0
        %386 = vmatpush.msra.mxu0 0.0
        %387 = vmatpush.msra.mxu0 0.0
        %388 = vmatpush.msra.mxu0 0.0
        %389 = vmatpush.msra.mxu0 0.0
        %390 = vmatpush.msra.mxu0 0.0
        %391 = vmatpush.msra.mxu0 0.0
        %392 = vmatpush.msra.mxu0 0.0
        %393 = vmatpush.msra.mxu0 0.0
        %394 = vmatpush.msra.mxu0 0.0
        %395 = vmatpush.msra.mxu0 0.0
        %396 = vmatpush.msra.mxu0 0.0
        %397 = vmatpush.msra.mxu0 0.0
        %398 = vmatpush.msra.mxu0 0.0
        %399 = vmatpush.msra.mxu0 %v342
        %400 = vmatpush.msra.mxu0 %v340
        %401 = vmatmul.f32.gmra.mxu0 %v374
        %v402 = vpop.f32.mrf.mxu0
        %v403 = vadd.f32 %v355, %v402
        %404 = vmatmul.f32.gmra.mxu0 %v377
        %v405 = vpop.f32.mrf.mxu0
        %v406 = vadd.f32 %v360, %v405
        %407 = vmatmul.f32.gmra.mxu0 %v380
        %v408 = vpop.f32.mrf.mxu0
        %v409 = vadd.f32 %v365, %v408
        %410 = vmatmul.f32.gmra.mxu0 %v383
        %v411 = vpop.f32.mrf.mxu0
        %v412 = vadd.f32 %v370, %v411
        %413 = vdwg.mxu0
        %414 = vmatpush.msra.mxu0 0.0
        %415 = vmatpush.msra.mxu0 0.0
        %416 = vmatpush.msra.mxu0 0.0
        %417 = vmatpush.msra.mxu0 0.0
        %418 = vmatpush.msra.mxu0 0.0
        %419 = vmatpush.msra.mxu0 0.0
        %420 = vmatpush.msra.mxu0 0.0
        %421 = vmatpush.msra.mxu0 0.0
        %422 = vmatpush.msra.mxu0 0.0
        %423 = vmatpush.msra.mxu0 0.0
        %424 = vmatpush.msra.mxu0 0.0
        %425 = vmatpush.msra.mxu0 0.0
        %426 = vmatpush.msra.mxu0 0.0
        %427 = vmatpush.msra.mxu0 0.0
        %428 = vmatpush.msra.mxu0 %v343
        %429 = vmatpush.msra.mxu0 %v341
        %430 = vmatmul.f32.gmra.mxu0 %v374
        %v431 = vpop.f32.mrf.mxu0
        %v432 = vadd.f32 %v355, %v431
        %433 = vmatmul.f32.gmra.mxu0 %v377
        %v434 = vpop.f32.mrf.mxu0
        %v435 = vadd.f32 %v360, %v434
        %436 = vmatmul.f32.gmra.mxu0 %v380
        %v437 = vpop.f32.mrf.mxu0
        %v438 = vadd.f32 %v365, %v437
        %439 = vmatmul.f32.gmra.mxu0 %v383
        %v440 = vpop.f32.mrf.mxu0
        %v441 = vadd.f32 %v370, %v440
        %442 = vdwg.mxu0
        %v443 = vlaneseq
        %v444 = vshrl.u32 %v443, 7
        %v445 = vadd.s32 %v444, 8
        %v446 = vadd.s32 %v444, 16
        %v447 = vadd.s32 %v444, 24
        %vm448 = vcmp.lt.s32.totalorder %v444, 31
        %vm449 = vcmp.lt.s32.totalorder %v445, 31
        %vm450 = vcmp.lt.s32.totalorder %v446, 31
        %vm451 = vcmp.lt.s32.totalorder %v447, 31
        %v452 = vmax.f32 %v403, 0.0
        %v453 = vmax.f32 %v432, 0.0
        %v454 = vmax.f32 %v406, 0.0
        %v455 = vmax.f32 %v435, 0.0
        %v456 = vmax.f32 %v409, 0.0
        %v457 = vmax.f32 %v438, 0.0
        %v458 = vmax.f32 %v412, 0.0
        %v459 = vmax.f32 %v441, 0.0
        %v460 = vxor.u32 %v403, 2147483648
        %v461 = vxor.u32 %v432, 2147483648
        %v462 = vxor.u32 %v406, 2147483648
        %v463 = vxor.u32 %v435, 2147483648
        %v464 = vxor.u32 %v409, 2147483648
        %v465 = vxor.u32 %v438, 2147483648
        %v466 = vxor.u32 %v412, 2147483648
        %v467 = vxor.u32 %v441, 2147483648
        %v468 = vmul.f32 %v460, 1.442695
        %v469 = vpow.pop %v468
        %v470 = vmul.f32 %v461, 1.442695
        %v471 = vpow.pop %v470
        %v472 = vmul.f32 %v462, 1.442695
        %v473 = vpow.pop %v472
        %v474 = vmul.f32 %v463, 1.442695
        %v475 = vpow.pop %v474
        %v476 = vmul.f32 %v464, 1.442695
        %v477 = vpow.pop %v476
        %v478 = vmul.f32 %v465, 1.442695
        %v479 = vpow.pop %v478
        %v480 = vmul.f32 %v466, 1.442695
        %v481 = vpow.pop %v480
        %v482 = vmul.f32 %v467, 1.442695
        %v483 = vpow.pop %v482
        %v484 = vadd.f32 %v469, 1.0
        %v485 = vadd.f32 %v471, 1.0
        %v486 = vadd.f32 %v473, 1.0
        %v487 = vadd.f32 %v475, 1.0
        %v488 = vadd.f32 %v477, 1.0
        %v489 = vadd.f32 %v479, 1.0
        %v490 = vadd.f32 %v481, 1.0
        %v491 = vadd.f32 %v483, 1.0
        %v492 = vrcp.pop %v484
        %v493 = vmul.f32 %v484, %v492
        %v494 = vsub.f32 1.0, %v493
        %v495 = vmul.f32 %v492, %v494
        %v496 = vadd.f32 %v492, %v495
        %vm497 = vweird.f32 %v484
        %vm498 = vweird.f32 %v492
        %vm499 = vmor %vm497, %vm498
        %v500 = vsel %vm499, %v492, %v496
        %v501 = vand.u32 2147483647, %v484
        %vm502 = vcmp.eq.f32.partialorder %v501, 8.507059e+37
        %v503 = vand.u32 %v484, 2147483648
        %v504 = vor.u32 1.1754944e-38, %v503
        %v505 = vsel %vm502, %v504, %v500
        %v506 = vmul.f32 1.0, %v505
        %v507 = vrcp.pop %v485
        %v508 = vmul.f32 %v485, %v507
        %v509 = vsub.f32 1.0, %v508
        %v510 = vmul.f32 %v507, %v509
        %v511 = vadd.f32 %v507, %v510
        %vm512 = vweird.f32 %v485
        %vm513 = vweird.f32 %v507
        %vm514 = vmor %vm512, %vm513
        %v515 = vsel %vm514, %v507, %v511
        %v516 = vand.u32 2147483647, %v485
        %vm517 = vcmp.eq.f32.partialorder %v516, 8.507059e+37
        %v518 = vand.u32 %v485, 2147483648
        %v519 = vor.u32 1.1754944e-38, %v518
        %v520 = vsel %vm517, %v519, %v515
        %v521 = vmul.f32 1.0, %v520
        %v522 = vrcp.pop %v486
        %v523 = vmul.f32 %v486, %v522
        %v524 = vsub.f32 1.0, %v523
        %v525 = vmul.f32 %v522, %v524
        %v526 = vadd.f32 %v522, %v525
        %vm527 = vweird.f32 %v486
        %vm528 = vweird.f32 %v522
        %vm529 = vmor %vm527, %vm528
        %v530 = vsel %vm529, %v522, %v526
        %v531 = vand.u32 2147483647, %v486
        %vm532 = vcmp.eq.f32.partialorder %v531, 8.507059e+37
        %v533 = vand.u32 %v486, 2147483648
        %v534 = vor.u32 1.1754944e-38, %v533
        %v535 = vsel %vm532, %v534, %v530
        %v536 = vmul.f32 1.0, %v535
        %v537 = vrcp.pop %v487
        %v538 = vmul.f32 %v487, %v537
        %v539 = vsub.f32 1.0, %v538
        %v540 = vmul.f32 %v537, %v539
        %v541 = vadd.f32 %v537, %v540
        %vm542 = vweird.f32 %v487
        %vm543 = vweird.f32 %v537
        %vm544 = vmor %vm542, %vm543
        %v545 = vsel %vm544, %v537, %v541
        %v546 = vand.u32 2147483647, %v487
        %vm547 = vcmp.eq.f32.partialorder %v546, 8.507059e+37
        %v548 = vand.u32 %v487, 2147483648
        %v549 = vor.u32 1.1754944e-38, %v548
        %v550 = vsel %vm547, %v549, %v545
        %v551 = vmul.f32 1.0, %v550
        %v552 = vrcp.pop %v488
        %v553 = vmul.f32 %v488, %v552
        %v554 = vsub.f32 1.0, %v553
        %v555 = vmul.f32 %v552, %v554
        %v556 = vadd.f32 %v552, %v555
        %vm557 = vweird.f32 %v488
        %vm558 = vweird.f32 %v552
        %vm559 = vmor %vm557, %vm558
        %v560 = vsel %vm559, %v552, %v556
        %v561 = vand.u32 2147483647, %v488
        %vm562 = vcmp.eq.f32.partialorder %v561, 8.507059e+37
        %v563 = vand.u32 %v488, 2147483648
        %v564 = vor.u32 1.1754944e-38, %v563
        %v565 = vsel %vm562, %v564, %v560
        %v566 = vmul.f32 1.0, %v565
        %v567 = vrcp.pop %v489
        %v568 = vmul.f32 %v489, %v567
        %v569 = vsub.f32 1.0, %v568
        %v570 = vmul.f32 %v567, %v569
        %v571 = vadd.f32 %v567, %v570
        %vm572 = vweird.f32 %v489
        %vm573 = vweird.f32 %v567
        %vm574 = vmor %vm572, %vm573
        %v575 = vsel %vm574, %v567, %v571
        %v576 = vand.u32 2147483647, %v489
        %vm577 = vcmp.eq.f32.partialorder %v576, 8.507059e+37
        %v578 = vand.u32 %v489, 2147483648
        %v579 = vor.u32 1.1754944e-38, %v578
        %v580 = vsel %vm577, %v579, %v575
        %v581 = vmul.f32 1.0, %v580
        %v582 = vrcp.pop %v490
        %v583 = vmul.f32 %v490, %v582
        %v584 = vsub.f32 1.0, %v583
        %v585 = vmul.f32 %v582, %v584
        %v586 = vadd.f32 %v582, %v585
        %vm587 = vweird.f32 %v490
        %vm588 = vweird.f32 %v582
        %vm589 = vmor %vm587, %vm588
        %v590 = vsel %vm589, %v582, %v586
        %v591 = vand.u32 2147483647, %v490
        %vm592 = vcmp.eq.f32.partialorder %v591, 8.507059e+37
        %v593 = vand.u32 %v490, 2147483648
        %v594 = vor.u32 1.1754944e-38, %v593
        %v595 = vsel %vm592, %v594, %v590
        %v596 = vmul.f32 1.0, %v595
        %v597 = vrcp.pop %v491
        %v598 = vmul.f32 %v491, %v597
        %v599 = vsub.f32 1.0, %v598
        %v600 = vmul.f32 %v597, %v599
        %v601 = vadd.f32 %v597, %v600
        %vm602 = vweird.f32 %v491
        %vm603 = vweird.f32 %v597
        %vm604 = vmor %vm602, %vm603
        %v605 = vsel %vm604, %v597, %v601
        %v606 = vand.u32 2147483647, %v491
        %vm607 = vcmp.eq.f32.partialorder %v606, 8.507059e+37
        %v608 = vand.u32 %v491, 2147483648
        %v609 = vor.u32 1.1754944e-38, %v608
        %v610 = vsel %vm607, %v609, %v605
        %v611 = vmul.f32 1.0, %v610
        %v612 = vsel %vm448, %v452, %v506
        %v613 = vsel %vm448, %v453, %v521
        %v614 = vsel %vm449, %v454, %v536
        %v615 = vsel %vm449, %v455, %v551
        %v616 = vsel %vm450, %v456, %v566
        %v617 = vsel %vm450, %v457, %v581
        %v618 = vsel %vm451, %v458, %v596
        %v619 = vsel %vm451, %v459, %v611
        %620 = vst [vmem:[%s262] sm:$0xff] %v612
        %621 = vst [vmem:[%s262 + $0x8] sm:$0xff] %v613
        %622 = vst [vmem:[%s262 + $0x10] sm:$0xff] %v614
        %623 = vst [vmem:[%s262 + $0x18] sm:$0xff] %v615
        %624 = vst [vmem:[%s262 + $0x20] sm:$0xff] %v616
        %625 = vst [vmem:[%s262 + $0x28] sm:$0xff] %v617
        %626 = vst [vmem:[%s262 + $0x30] sm:$0xff] %v618
        %627 = vst [vmem:[%s262 + $0x38] sm:$0xff] %v619
        %s628 = sand.u32 %s156, 1
        %s629 = scalar_lea.sflag [#allocation4], %s628
        %s630 = sand.u32 %s156, 1
        %s631 = smul.addr %s630, 64
        %s632 = scalar_lea.vmem [#allocation5], %s631
        // Predicated region
        $region45: #{tpu_custom_call.1} parent=39 // pred_check
          %p633 = pneg %p166
        $region46: #{tpu_custom_call.1} parent=39 // pred_check_branch
          %635 = sbr.rel (%p633) target = $region48
        $region47: #{tpu_custom_call.1} parent=39 // pred_region
          %s636 = smul.u32 2, %s27
          %638 = vsyncadd %s629, 0
          %s639 = smul.addr %s26, 8
          %s640 = sadd.s32 %s636, %s639
          %s641 = smul.addr %s640, 8
          %s642 = scalar_lea.hbm %s5, %s641
          %s643 = sshll.u32 %s632, 4
          %s644 = int_to_ptr.vmem [resolvable:$true] %s643
          %s645 = sshll.u32 %s642, 4
          %s646 = int_to_ptr.hbm [resolvable:$true] %s645
          %651 = dma.vmem_to_hbm [thread:$0]  %s644, 1024, %s646, %s629, 256, 256, 16
        $region48: #{tpu_custom_call.1} parent=39 // pred_fallthru
          _
      $region40: #{tpu_custom_call.1} parent=5 // pred_fallthru
        _
      %p652 = scmp.le.s32.totalorder 2, %s17
      // Predicated region
      $region49: #{tpu_custom_call.1} parent=5 // pred_check
        %p653 = pneg %p652
      $region50: #{tpu_custom_call.1} parent=5 // pred_check_branch
        %655 = sbr.rel (%p653) target = $region52
      $region51: #{tpu_custom_call.1} parent=5 // pred_region
        %s656 = ssub.s32 %s17, 2
        // Predicated region
        $region53: #{tpu_custom_call.1} parent=51 // pred_check
          %p657 = pneg %p172
        $region54: #{tpu_custom_call.1} parent=51 // pred_check_branch
          %659 = sbr.rel (%p657) target = $region56
        $region55: #{tpu_custom_call.1} parent=51 // pred_region
          %s660 = sand.u32 %s157, 1
          %s661 = scalar_lea.sflag [#allocation4], %s660
          %s662 = sand.u32 %s157, 1
          %s663 = smul.addr %s662, 64
          %s664 = scalar_lea.vmem [#allocation5], %s663
          %666 = dma.done %s661, 1024
        $region56: #{tpu_custom_call.1} parent=51 // pred_fallthru
          _
      $region52: #{tpu_custom_call.1} parent=5 // pred_fallthru
        _
    $region6: #{tpu_custom_call.1} parent=1 // loop_footer
      %s21 = sadd.s32 1, %s17
    $region7: #{tpu_custom_call.1} parent=1 // loop_footer_branch
      %16 = sbr.rel target = $region3
    $region8: #{tpu_custom_call.1} parent=1 // loop_exit
      _
    %667 = vsyncpa [#allocation3], 1
    %s668 = scalar_lea.sflag [#allocation3], 1
    %669 = vsyncpa %s668, 1
    %670 = vsyncpa [#allocation4], 1
    %s671 = scalar_lea.sflag [#allocation4], 1
    %672 = vsyncpa %s671, 1

</llo_original>
